<compile_context>
chip_gen: v6e
topology: v6e:2x2x1
jax: 0.10.0
libtpu: 0.0.40
codegen_flags: <defaults>
</compile_context>

<pallas_src>
import functools

import jax
import jax.numpy as jnp
import numpy as np
from jax.experimental import pallas as pl
from jax.experimental.pallas import tpu as pltpu

_LANE = 128


def _loss_kernel(pred_ref, tgt_ref, dice_ref, focal_ref,
                 inter_acc, psum_acc, tsum_acc, fsum_acc,
                 *, gamma, tiles_per_chunk, n_tiles, valid_in_last, mask_needed):
    """Blocks:
      pred_ref  : (1, C, TR, 128) float logits
      tgt_ref   : (1, 1, TR, 128) int32 labels (-1 in padded columns)
      dice_ref  : (1, 1, C, 3)  f32 -> [intersection, pred_sum, target_sum]
      focal_ref : (1, 1, 1, 1)  f32 -> sum of focal terms
      *_acc     : VMEM lane-partial accumulators ((C,128) x3, (1,128))
    """
    t = pl.program_id(2)

    @pl.when(t == 0)
    def _():
        inter_acc[...] = jnp.zeros_like(inter_acc)
        psum_acc[...] = jnp.zeros_like(psum_acc)
        tsum_acc[...] = jnp.zeros_like(tsum_acc)
        fsum_acc[...] = jnp.zeros_like(fsum_acc)

    logits = pred_ref[0].astype(jnp.float32)        # (C, TR, L)
    tgt = tgt_ref[0]                                # (1, TR, L) int32
    C, TR, L = logits.shape

    # Softmax over the class (major) axis -> VPU combines, EUP exp/reciprocal.
    m = jnp.max(logits, axis=0, keepdims=True)      # (1, TR, L)
    z = logits - m
    ez = jnp.exp(z)                                 # EUP: C exps / voxel
    denom = jnp.sum(ez, axis=0, keepdims=True)      # (1, TR, L)
    inv = pl.reciprocal(denom, approx=False)        # exact; keeps 1e-5 tolerance
    sm = ez * inv                                   # (C, TR, L)

    cls_ids = jax.lax.broadcasted_iota(jnp.int32, (C, TR, L), 0)
    onehot = (cls_ids == tgt).astype(jnp.float32)   # (C, TR, L)
    sp = sm * onehot                                # reused: intersection and p_t

    # Focal term on the target-probability plane only (the reference's per-class
    # focal tensor is nonzero only at the target class):
    #   fl = (1 - p_t)^gamma * (-log p_t)     (focal_alpha folded in the epilogue)
    p_t = jnp.sum(sp, axis=0, keepdims=True)        # (1, TR, L)
    one_minus = jnp.maximum(1.0 - p_t, 0.0)         # clamp ulp overshoot of softmax
    neg_log_pt = -jnp.log(jnp.maximum(p_t, 1e-30))  # finite even in padded columns
    g_int = int(gamma)
    if float(g_int) == float(gamma) and 0 <= g_int <= 4:
        if g_int == 0:
            w = jnp.ones_like(one_minus)
        else:
            w = one_minus
            for _ in range(g_int - 1):
                w = w * one_minus                   # VPU muls, no log/exp
    else:
        w = jnp.power(one_minus, jnp.float32(gamma))
    fl = w * neg_log_pt                             # (1, TR, L)

    # Lane-partial reductions (reduce rows, keep the 128-lane axis).
    inter_acc[...] += jnp.sum(sp, axis=1)           # (C, L)
    tsum_acc[...] += jnp.sum(onehot, axis=1)        # (C, L)

    if mask_needed:
        # Only the last *global* tile contains padded columns: pay for the mask
        # (iotas + compare + extra muls) on that single tile.
        is_last_global = (pl.program_id(1) * tiles_per_chunk + t) == (n_tiles - 1)

        @pl.when(jnp.logical_not(is_last_global))
        def _():
            psum_acc[...] += jnp.sum(sm, axis=1)
            fsum_acc[...] += jnp.sum(fl, axis=1)

        @pl.when(is_last_global)
        def _():
            row_ids = jax.lax.broadcasted_iota(jnp.int32, (1, TR, L), 1)
            lane_ids = jax.lax.broadcasted_iota(jnp.int32, (1, TR, L), 2)
            valid = ((row_ids * L + lane_ids) < valid_in_last).astype(jnp.float32)
            psum_acc[...] += jnp.sum(sm * valid, axis=1)
            fsum_acc[...] += jnp.sum(fl * valid, axis=1)
    else:
        psum_acc[...] += jnp.sum(sm, axis=1)
        fsum_acc[...] += jnp.sum(fl, axis=1)

    # Final lane fold + one tiny store per (batch, chunk).
    @pl.when(t == pl.num_programs(2) - 1)
    def _():
        inter = jnp.sum(inter_acc[...], axis=1, keepdims=True)   # (C, 1)
        ps = jnp.sum(psum_acc[...], axis=1, keepdims=True)
        ts = jnp.sum(tsum_acc[...], axis=1, keepdims=True)
        col = jax.lax.broadcasted_iota(jnp.int32, (C, 3), 1)
        stats = jnp.where(col == 0, inter, jnp.where(col == 1, ps, ts))  # (C, 3)
        dice_ref[...] = stats[None, None, :, :]
        focal_ref[...] = jnp.sum(fsum_acc[...], axis=1, keepdims=True)[None, None, :, :]


def _vmem_capacity_bytes(default=64 * 1024 * 1024):
    """Physical VMEM of the local chip; conservative v7x default on failure."""
    try:
        cap = getattr(pltpu.get_tpu_info(), "vmem_capacity_bytes", None)
        if cap:
            return int(cap)
    except Exception:
        pass
    return default


def _pick_tiling(rows_needed, rows_cap, want_even_tiles):
    """Pick (tile_rows, n_tiles, rows_pad).  Prefer divisor tiles (no row padding),
    optionally with an even tile count so the spatial axis can feed 2 TensorCores."""
    cap8 = max(8, (rows_cap // 8) * 8)

    def search(require_even):
        hi = min(cap8, (rows_needed // 8) * 8)
        for r in range(hi, 7, -8):
            if rows_needed % r == 0:
                n = rows_needed // r
                if (not require_even) or n % 2 == 0:
                    return r, n
        return None

    if want_even_tiles:
        hit = search(True)
        if hit is not None:
            return hit[0], hit[1], rows_needed
    hit = search(False)
    if hit is not None:
        return hit[0], hit[1], rows_needed
    if rows_needed <= rows_cap:
        return rows_needed, 1, rows_needed        # single full-extent tile, no pad
    # Rare fallback: minimal row padding with a capped multiple-of-8 tile.
    n0 = -(-rows_needed // cap8)
    tile = min(((-(-rows_needed // n0) + 7) // 8) * 8, cap8)
    n = -(-rows_needed // tile)
    return tile, n, n * tile


def combined_focal_dice_loss(pred, target, *, alpha=0.5, beta=0.5, gamma=2.0,
                             focal_alpha=1.0, smooth=1e-5):
    """pred: (N, C, H, W, D) float logits; target: (N, H, W, D) int labels."""
    N, C = int(pred.shape[0]), int(pred.shape[1])
    S = int(np.prod(pred.shape[2:]))
    rows_needed = -(-S // _LANE)

    # VMEM budgets derived from the chip (v5e/v6e: 128 MiB, v7x: 64 MiB).
    vmem_cap = _vmem_capacity_bytes()
    working_budget = (vmem_cap * 3) // 8                 # ~48 MiB / ~24 MiB
    vmem_limit = min((vmem_cap * 3) // 4, 100 * 1024 * 1024)
    # Double-buffered inputs + ~8 live (C, rows, 128) f32 temporaries + misc planes.
    bytes_per_row = (2 * (C + 1) + 8 * C + 8) * 4 * _LANE
    rows_budget = max(8, working_budget // bytes_per_row)
    rows_cap = max(8, min(512, (rows_budget // 8) * 8))

    # Prefer an even tile count when the batch axis alone can't feed 2 TCs (v7x).
    tile_rows, n_tiles, rows_pad = _pick_tiling(rows_needed, rows_cap, N < 2)
    n_chunks = 2 if (N < 2 and n_tiles >= 2 and n_tiles % 2 == 0) else 1
    tiles_per_chunk = n_tiles // n_chunks

    S_pad = rows_pad * _LANE
    pred3 = pred.reshape(N, C, S)
    tgt3 = target.reshape(N, 1, S).astype(jnp.int32)
    if S_pad != S:
        # Fallback only (S not a multiple of 128, or no divisor tile existed).
        pad = S_pad - S
        pred3 = jnp.pad(pred3, ((0, 0), (0, 0), (0, pad)))
        tgt3 = jnp.pad(tgt3, ((0, 0), (0, 0), (0, pad)), constant_values=-1)
    pred4 = pred3.reshape(N, C, rows_pad, _LANE)          # reshape only: no HBM copy
    tgt4 = tgt3.reshape(N, 1, rows_pad, _LANE)

    kernel = functools.partial(
        _loss_kernel, gamma=float(gamma), tiles_per_chunk=tiles_per_chunk,
        n_tiles=n_tiles, valid_in_last=S - (n_tiles - 1) * tile_rows * _LANE,
        mask_needed=(S_pad != S))

    def in_map(n, ch, t):
        return (n, 0, ch * tiles_per_chunk + t, 0)

    def out_map(n, ch, t):
        return (n, ch, 0, 0)

    dice_stats, focal_stats = pl.pallas_call(
        kernel,
        out_shape=(jax.ShapeDtypeStruct((N, n_chunks, C, 3), jnp.float32),
                   jax.ShapeDtypeStruct((N, n_chunks, 1, 1), jnp.float32)),
        grid_spec=pltpu.PrefetchScalarGridSpec(
            num_scalar_prefetch=0,
            grid=(N, n_chunks, tiles_per_chunk),
            in_specs=[
                pl.BlockSpec((1, C, tile_rows, _LANE), in_map),
                pl.BlockSpec((1, 1, tile_rows, _LANE), in_map),
            ],
            out_specs=[
                pl.BlockSpec((1, 1, C, 3), out_map),
                pl.BlockSpec((1, 1, 1, 1), out_map),
            ],
            scratch_shapes=[pltpu.VMEM((C, _LANE), jnp.float32)] * 3
                         + [pltpu.VMEM((1, _LANE), jnp.float32)],
        ),
        compiler_params=pltpu.CompilerParams(
            dimension_semantics=("parallel", "parallel", "arbitrary"),
            vmem_limit_bytes=int(vmem_limit)),
    )(pred4, tgt4)

    dice_stats = jnp.sum(dice_stats, axis=1)              # merge parallel chunks -> (N, C, 3)
    intersection = dice_stats[..., 0]
    union = dice_stats[..., 1] + dice_stats[..., 2]
    dice = (2.0 * intersection + smooth) / (union + smooth)
    dice_l = 1.0 - jnp.mean(dice)
    focal_l = float(focal_alpha) * jnp.sum(focal_stats) / float(N * C * S)
    return alpha * dice_l + beta * focal_l


def _reference_loss(pred, target, *, alpha=0.5, beta=0.5, gamma=2.0,
                    focal_alpha=1.0, smooth=1e-5):
    """Pure-JAX mirror of the PyTorch module, for correctness checking."""
    C = pred.shape[1]
    sm = jax.nn.softmax(pred, axis=1)
    logp = jax.nn.log_softmax(pred, axis=1)
    onehot = jax.nn.one_hot(target, C, axis=1, dtype=pred.dtype)   # (N,C,H,W,D)
    inter = jnp.sum(sm * onehot, axis=(2, 3, 4))
    union = jnp.sum(sm, axis=(2, 3, 4)) + jnp.sum(onehot, axis=(2, 3, 4))
    dice = (2.0 * inter + smooth) / (union + smooth)
    dice_l = 1.0 - jnp.mean(dice)
    ce = -onehot * logp
    pt = jnp.exp(-ce)
    fl = focal_alpha * (1.0 - pt) ** gamma * ce
    focal_l = jnp.mean(fl)
    return alpha * dice_l + beta * focal_l


if __name__ == "__main__":
    key = jax.random.PRNGKey(0)
    k1, k2, k3, k4 = jax.random.split(key, 4)

    # Config 1: batch=2, classes=4, 8x8x8 volume (S = 512 = 4*128, divisor tiling,
    # no padding, no wrapper-side copies).
    pred = jax.random.normal(k1, (2, 4, 8, 8, 8), dtype=jnp.float32)
    target = jax.random.randint(k2, (2, 8, 8, 8), 0, 4, dtype=jnp.int32)
    out = jax.block_until_ready(combined_focal_dice_loss(pred, target))
    ref = jax.block_until_ready(_reference_loss(pred, target))
    np.testing.assert_allclose(np.asarray(out), np.asarray(ref), rtol=1e-5, atol=1e-5)

    # Config 2: batch=1, classes=3, 5x6x7 volume (S = 210, exercises the gated
    # last-tile padding-mask path).
    pred2 = jax.random.normal(k3, (1, 3, 5, 6, 7), dtype=jnp.float32)
    target2 = jax.random.randint(k4, (1, 5, 6, 7), 0, 3, dtype=jnp.int32)
    out2 = jax.block_until_ready(combined_focal_dice_loss(pred2, target2))
    ref2 = jax.block_until_ready(_reference_loss(pred2, target2))
    np.testing.assert_allclose(np.asarray(out2), np.asarray(ref2), rtol=1e-5, atol=1e-5)

    print("KERNEL_OK")
</pallas_src>

<mosaic_0001>
module attributes {stable_mosaic.version = 11 : i64} {
  func.func @_loss_kernel(%arg0: i32, %arg1: i32, %arg2: i32, %arg3: memref<1x4x4x128xf32, #tpu.memory_space<vmem>>, %arg4: memref<1x1x4x128xi32, #tpu.memory_space<vmem>>, %arg5: memref<1x1x4x3xf32, #tpu.memory_space<vmem>>, %arg6: memref<1x1x1x1xf32, #tpu.memory_space<vmem>>, %arg7: memref<4x128xf32, #tpu.memory_space<vmem>>, %arg8: memref<4x128xf32, #tpu.memory_space<vmem>>, %arg9: memref<4x128xf32, #tpu.memory_space<vmem>>, %arg10: memref<1x128xf32, #tpu.memory_space<vmem>>) attributes {dimension_semantics = [#tpu.dimension_semantics<parallel>, #tpu.dimension_semantics<parallel>, #tpu.dimension_semantics<arbitrary>], iteration_bounds = array<i64: 2, 1, 1>, scalar_prefetch = 0 : i64, scratch_operands = 4 : i64, tpu.core_type = #tpu.core_type<tc>, window_params = [{transform_indices = @transform_0, window_bounds = array<i64: 1, 4, 4, 128>}, {transform_indices = @transform_1, window_bounds = array<i64: 1, 1, 4, 128>}, {transform_indices = @transform_2, window_bounds = array<i64: 1, 1, 4, 3>}, {transform_indices = @transform_3, window_bounds = array<i64: 1, 1, 1, 1>}]} {
    %c0_i32 = arith.constant 0 : i32
    %0 = arith.cmpi eq, %arg2, %c0_i32 : i32
    %1 = arith.extui %0 : i1 to i32
    %c0_i32_0 = arith.constant 0 : i32
    %2 = arith.cmpi ne, %1, %c0_i32_0 : i32
    scf.if %2 {
      %cst_36 = arith.constant 0.000000e+00 : f32
      %55 = vector.broadcast %cst_36 : f32 to vector<4x128xf32>
      %c0_37 = arith.constant 0 : index
      %c0_38 = arith.constant 0 : index
      %56 = vector.load %arg7[%c0_37, %c0_38] : memref<4x128xf32, #tpu.memory_space<vmem>>, vector<4x128xf32>
      tpu.vector_store %arg7[%c0_37, %c0_38], %55 {strides = array<i32>} : memref<4x128xf32, #tpu.memory_space<vmem>>, vector<4x128xf32>,
      %cst_39 = arith.constant 0.000000e+00 : f32
      %57 = vector.broadcast %cst_39 : f32 to vector<4x128xf32>
      %c0_40 = arith.constant 0 : index
      %c0_41 = arith.constant 0 : index
      %58 = vector.load %arg8[%c0_40, %c0_41] : memref<4x128xf32, #tpu.memory_space<vmem>>, vector<4x128xf32>
      tpu.vector_store %arg8[%c0_40, %c0_41], %57 {strides = array<i32>} : memref<4x128xf32, #tpu.memory_space<vmem>>, vector<4x128xf32>,
      %cst_42 = arith.constant 0.000000e+00 : f32
      %59 = vector.broadcast %cst_42 : f32 to vector<4x128xf32>
      %c0_43 = arith.constant 0 : index
      %c0_44 = arith.constant 0 : index
      %60 = vector.load %arg9[%c0_43, %c0_44] : memref<4x128xf32, #tpu.memory_space<vmem>>, vector<4x128xf32>
      tpu.vector_store %arg9[%c0_43, %c0_44], %59 {strides = array<i32>} : memref<4x128xf32, #tpu.memory_space<vmem>>, vector<4x128xf32>,
      %cst_45 = arith.constant 0.000000e+00 : f32
      %61 = vector.broadcast %cst_45 : f32 to vector<1x128xf32>
      %c0_46 = arith.constant 0 : index
      %c0_47 = arith.constant 0 : index
      %62 = vector.load %arg10[%c0_46, %c0_47] : memref<1x128xf32, #tpu.memory_space<vmem>>, vector<1x128xf32>
      tpu.vector_store %arg10[%c0_46, %c0_47], %61 {strides = array<i32>} : memref<1x128xf32, #tpu.memory_space<vmem>>, vector<1x128xf32>,
    } else {
    }
    %c0 = arith.constant 0 : index
    %c0_1 = arith.constant 0 : index
    %c0_2 = arith.constant 0 : index
    %c0_3 = arith.constant 0 : index
    %3 = vector.load %arg3[%c0, %c0_1, %c0_2, %c0_3] : memref<1x4x4x128xf32, #tpu.memory_space<vmem>>, vector<1x4x4x128xf32>
    %4 = vector.shape_cast %3 : vector<1x4x4x128xf32> to vector<4x4x128xf32>
    %c0_4 = arith.constant 0 : index
    %c0_5 = arith.constant 0 : index
    %c0_6 = arith.constant 0 : index
    %c0_7 = arith.constant 0 : index
    %5 = vector.load %arg4[%c0_4, %c0_5, %c0_6, %c0_7] : memref<1x1x4x128xi32, #tpu.memory_space<vmem>>, vector<1x1x4x128xi32>
    %6 = vector.shape_cast %5 : vector<1x1x4x128xi32> to vector<1x4x128xi32>
    %cst = arith.constant dense<0xFF800000> : vector<4x128xf32>
    %7 = vector.multi_reduction <maximumf>, %4, %cst [0] : vector<4x4x128xf32> to vector<4x128xf32>
    %8 = vector.shape_cast %7 : vector<4x128xf32> to vector<1x4x128xf32>
    %9 = vector.broadcast %8 : vector<1x4x128xf32> to vector<4x4x128xf32>
    %10 = arith.subf %4, %9 : vector<4x4x128xf32>
    %11 = math.exp %10 : vector<4x4x128xf32>
    %cst_8 = arith.constant dense<0.000000e+00> : vector<4x128xf32>
    %12 = vector.multi_reduction <add>, %11, %cst_8 [0] : vector<4x4x128xf32> to vector<4x128xf32>
    %13 = vector.shape_cast %12 : vector<4x128xf32> to vector<1x4x128xf32>
    %14 = tpu.reciprocal %13 : vector<1x4x128xf32> -> vector<1x4x128xf32>
    %15 = vector.broadcast %14 : vector<1x4x128xf32> to vector<4x4x128xf32>
    %16 = arith.mulf %11, %15 : vector<4x4x128xf32>
    %17 = tpu.iota {dimensions = array<i32: 0>} : vector<4x4x128xi32>
    %18 = vector.broadcast %6 : vector<1x4x128xi32> to vector<4x4x128xi32>
    %19 = arith.cmpi eq, %17, %18 : vector<4x4x128xi32>
    %20 = arith.extui %19 : vector<4x4x128xi1> to vector<4x4x128xi32>
    %21 = arith.sitofp %20 : vector<4x4x128xi32> to vector<4x4x128xf32>
    %22 = arith.mulf %16, %21 : vector<4x4x128xf32>
    %cst_9 = arith.constant dense<0.000000e+00> : vector<4x128xf32>
    %23 = vector.multi_reduction <add>, %22, %cst_9 [0] : vector<4x4x128xf32> to vector<4x128xf32>
    %24 = vector.shape_cast %23 : vector<4x128xf32> to vector<1x4x128xf32>
    %cst_10 = arith.constant 1.000000e+00 : f32
    %25 = vector.broadcast %cst_10 : f32 to vector<1x4x128xf32>
    %26 = arith.subf %25, %24 : vector<1x4x128xf32>
    %cst_11 = arith.constant 0.000000e+00 : f32
    %27 = vector.broadcast %cst_11 : f32 to vector<1x4x128xf32>
    %28 = arith.maximumf %26, %27 : vector<1x4x128xf32>
    %cst_12 = arith.constant 1.000000e-30 : f32
    %29 = vector.broadcast %cst_12 : f32 to vector<1x4x128xf32>
    %30 = arith.maximumf %24, %29 : vector<1x4x128xf32>
    %31 = math.log %30 : vector<1x4x128xf32>
    %cst_13 = arith.constant 0.000000e+00 : f32
    %32 = vector.broadcast %cst_13 : f32 to vector<1x4x128xf32>
    %33 = arith.subf %32, %31 : vector<1x4x128xf32>
    %34 = arith.mulf %28, %28 : vector<1x4x128xf32>
    %35 = arith.mulf %34, %33 : vector<1x4x128xf32>
    %c0_14 = arith.constant 0 : index
    %c0_15 = arith.constant 0 : index
    %36 = vector.load %arg7[%c0_14, %c0_15] : memref<4x128xf32, #tpu.memory_space<vmem>>, vector<4x128xf32>
    %cst_16 = arith.constant dense<0.000000e+00> : vector<4x128xf32>
    %37 = vector.multi_reduction <add>, %22, %cst_16 [1] : vector<4x4x128xf32> to vector<4x128xf32>
    %38 = arith.addf %36, %37 : vector<4x128xf32>
    %c0_17 = arith.constant 0 : index
    %c0_18 = arith.constant 0 : index
    %39 = vector.load %arg7[%c0_17, %c0_18] : memref<4x128xf32, #tpu.memory_space<vmem>>, vector<4x128xf32>
    tpu.vector_store %arg7[%c0_17, %c0_18], %38 {strides = array<i32>} : memref<4x128xf32, #tpu.memory_space<vmem>>, vector<4x128xf32>,
    %c0_19 = arith.constant 0 : index
    %c0_20 = arith.constant 0 : index
    %40 = vector.load %arg9[%c0_19, %c0_20] : memref<4x128xf32, #tpu.memory_space<vmem>>, vector<4x128xf32>
    %cst_21 = arith.constant dense<0.000000e+00> : vector<4x128xf32>
    %41 = vector.multi_reduction <add>, %21, %cst_21 [1] : vector<4x4x128xf32> to vector<4x128xf32>
    %42 = arith.addf %40, %41 : vector<4x128xf32>
    %c0_22 = arith.constant 0 : index
    %c0_23 = arith.constant 0 : index
    %43 = vector.load %arg9[%c0_22, %c0_23] : memref<4x128xf32, #tpu.memory_space<vmem>>, vector<4x128xf32>
    tpu.vector_store %arg9[%c0_22, %c0_23], %42 {strides = array<i32>} : memref<4x128xf32, #tpu.memory_space<vmem>>, vector<4x128xf32>,
    %c0_24 = arith.constant 0 : index
    %c0_25 = arith.constant 0 : index
    %44 = vector.load %arg8[%c0_24, %c0_25] : memref<4x128xf32, #tpu.memory_space<vmem>>, vector<4x128xf32>
    %cst_26 = arith.constant dense<0.000000e+00> : vector<4x128xf32>
    %45 = vector.multi_reduction <add>, %16, %cst_26 [1] : vector<4x4x128xf32> to vector<4x128xf32>
    %46 = arith.addf %44, %45 : vector<4x128xf32>
    %c0_27 = arith.constant 0 : index
    %c0_28 = arith.constant 0 : index
    %47 = vector.load %arg8[%c0_27, %c0_28] : memref<4x128xf32, #tpu.memory_space<vmem>>, vector<4x128xf32>
    tpu.vector_store %arg8[%c0_27, %c0_28], %46 {strides = array<i32>} : memref<4x128xf32, #tpu.memory_space<vmem>>, vector<4x128xf32>,
    %c0_29 = arith.constant 0 : index
    %c0_30 = arith.constant 0 : index
    %48 = vector.load %arg10[%c0_29, %c0_30] : memref<1x128xf32, #tpu.memory_space<vmem>>, vector<1x128xf32>
    %cst_31 = arith.constant dense<0.000000e+00> : vector<1x128xf32>
    %49 = vector.multi_reduction <add>, %35, %cst_31 [1] : vector<1x4x128xf32> to vector<1x128xf32>
    %50 = arith.addf %48, %49 : vector<1x128xf32>
    %c0_32 = arith.constant 0 : index
    %c0_33 = arith.constant 0 : index
    %51 = vector.load %arg10[%c0_32, %c0_33] : memref<1x128xf32, #tpu.memory_space<vmem>>, vector<1x128xf32>
    tpu.vector_store %arg10[%c0_32, %c0_33], %50 {strides = array<i32>} : memref<1x128xf32, #tpu.memory_space<vmem>>, vector<1x128xf32>,
    %c0_i32_34 = arith.constant 0 : i32
    %52 = arith.cmpi eq, %arg2, %c0_i32_34 : i32
    %53 = arith.extui %52 : i1 to i32
    %c0_i32_35 = arith.constant 0 : i32
    %54 = arith.cmpi ne, %53, %c0_i32_35 : i32
    scf.if %54 {
      %c0_36 = arith.constant 0 : index
      %c0_37 = arith.constant 0 : index
      %55 = vector.load %arg7[%c0_36, %c0_37] : memref<4x128xf32, #tpu.memory_space<vmem>>, vector<4x128xf32>
      %cst_38 = arith.constant dense<0.000000e+00> : vector<4xf32>
      %56 = vector.multi_reduction <add>, %55, %cst_38 [1] : vector<4x128xf32> to vector<4xf32>
      %57 = vector.shape_cast %56 : vector<4xf32> to vector<4x1xf32>
      %c0_39 = arith.constant 0 : index
      %c0_40 = arith.constant 0 : index
      %58 = vector.load %arg8[%c0_39, %c0_40] : memref<4x128xf32, #tpu.memory_space<vmem>>, vector<4x128xf32>
      %cst_41 = arith.constant dense<0.000000e+00> : vector<4xf32>
      %59 = vector.multi_reduction <add>, %58, %cst_41 [1] : vector<4x128xf32> to vector<4xf32>
      %60 = vector.shape_cast %59 : vector<4xf32> to vector<4x1xf32>
      %c0_42 = arith.constant 0 : index
      %c0_43 = arith.constant 0 : index
      %61 = vector.load %arg9[%c0_42, %c0_43] : memref<4x128xf32, #tpu.memory_space<vmem>>, vector<4x128xf32>
      %cst_44 = arith.constant dense<0.000000e+00> : vector<4xf32>
      %62 = vector.multi_reduction <add>, %61, %cst_44 [1] : vector<4x128xf32> to vector<4xf32>
      %63 = vector.shape_cast %62 : vector<4xf32> to vector<4x1xf32>
      %64 = tpu.iota {dimensions = array<i32: 1>} : vector<4x3xi32>
      %c0_i32_45 = arith.constant 0 : i32
      %65 = vector.broadcast %c0_i32_45 : i32 to vector<4x3xi32>
      %66 = arith.cmpi eq, %64, %65 : vector<4x3xi32>
      %c1_i32 = arith.constant 1 : i32
      %67 = vector.broadcast %c1_i32 : i32 to vector<4x3xi32>
      %68 = arith.cmpi eq, %64, %67 : vector<4x3xi32>
      %69 = vector.shape_cast %60 : vector<4x1xf32> to vector<4x1xf32>
      %70 = vector.broadcast %69 : vector<4x1xf32> to vector<4x3xf32>
      %71 = vector.shape_cast %63 : vector<4x1xf32> to vector<4x1xf32>
      %72 = vector.broadcast %71 : vector<4x1xf32> to vector<4x3xf32>
      %73 = arith.select %68, %70, %72 : vector<4x3xi1>, vector<4x3xf32>
      %74 = vector.shape_cast %57 : vector<4x1xf32> to vector<4x1xf32>
      %75 = vector.broadcast %74 : vector<4x1xf32> to vector<4x3xf32>
      %76 = arith.select %66, %75, %73 : vector<4x3xi1>, vector<4x3xf32>
      %77 = vector.shape_cast %76 : vector<4x3xf32> to vector<1x1x4x3xf32>
      %c0_46 = arith.constant 0 : index
      %c0_47 = arith.constant 0 : index
      %c0_48 = arith.constant 0 : index
      %c0_49 = arith.constant 0 : index
      %78 = vector.load %arg5[%c0_46, %c0_47, %c0_48, %c0_49] : memref<1x1x4x3xf32, #tpu.memory_space<vmem>>, vector<1x1x4x3xf32>
      tpu.vector_store %arg5[%c0_46, %c0_47, %c0_48, %c0_49], %77 {strides = array<i32>} : memref<1x1x4x3xf32, #tpu.memory_space<vmem>>, vector<1x1x4x3xf32>,
      %c0_50 = arith.constant 0 : index
      %c0_51 = arith.constant 0 : index
      %79 = vector.load %arg10[%c0_50, %c0_51] : memref<1x128xf32, #tpu.memory_space<vmem>>, vector<1x128xf32>
      %cst_52 = arith.constant dense<0.000000e+00> : vector<1xf32>
      %80 = vector.multi_reduction <add>, %79, %cst_52 [1] : vector<1x128xf32> to vector<1xf32>
      %81 = vector.shape_cast %80 : vector<1xf32> to vector<1x1xf32>
      %82 = vector.shape_cast %81 : vector<1x1xf32> to vector<1x1x1x1xf32>
      %c0_53 = arith.constant 0 : index
      %c0_54 = arith.constant 0 : index
      %c0_55 = arith.constant 0 : index
      %c0_56 = arith.constant 0 : index
      %83 = vector.load %arg6[%c0_53, %c0_54, %c0_55, %c0_56] : memref<1x1x1x1xf32, #tpu.memory_space<vmem>>, vector<1x1x1x1xf32>
      tpu.vector_store %arg6[%c0_53, %c0_54, %c0_55, %c0_56], %82 {strides = array<i32>} : memref<1x1x1x1xf32, #tpu.memory_space<vmem>>, vector<1x1x1x1xf32>,
    } else {
    }
    return
  }
  func.func @transform_0(%arg0: i32, %arg1: i32, %arg2: i32) -> (i32, i32, i32, i32) {
    %c1_i32 = arith.constant 1 : i32
    %0 = arith.muli %arg1, %c1_i32 : i32
    %1 = arith.addi %0, %arg2 : i32
    %c0_i32 = arith.constant 0 : i32
    %c0_i32_0 = arith.constant 0 : i32
    %c0_i32_1 = arith.constant 0 : i32
    return %arg0, %c0_i32, %1, %c0_i32_0 : i32, i32, i32, i32
  }
  func.func @transform_1(%arg0: i32, %arg1: i32, %arg2: i32) -> (i32, i32, i32, i32) {
    %c1_i32 = arith.constant 1 : i32
    %0 = arith.muli %arg1, %c1_i32 : i32
    %1 = arith.addi %0, %arg2 : i32
    %c0_i32 = arith.constant 0 : i32
    %c0_i32_0 = arith.constant 0 : i32
    %c0_i32_1 = arith.constant 0 : i32
    return %arg0, %c0_i32, %1, %c0_i32_0 : i32, i32, i32, i32
  }
  func.func @transform_2(%arg0: i32, %arg1: i32, %arg2: i32) -> (i32, i32, i32, i32) {
    %c0_i32 = arith.constant 0 : i32
    %c0_i32_0 = arith.constant 0 : i32
    %c0_i32_1 = arith.constant 0 : i32
    return %arg0, %arg1, %c0_i32, %c0_i32_0 : i32, i32, i32, i32
  }
  func.func @transform_3(%arg0: i32, %arg1: i32, %arg2: i32) -> (i32, i32, i32, i32) {
    %c0_i32 = arith.constant 0 : i32
    %c0_i32_0 = arith.constant 0 : i32
    %c0_i32_1 = arith.constant 0 : i32
    return %arg0, %arg1, %c0_i32, %c0_i32_0 : i32, i32, i32, i32
  }
}

</mosaic_0001>

<llo_original>
// kernel: tpu_custom_call.1
$region0: #{tpu_custom_call.1}
  #allocation0 [shape = 'u32[]', space=smem, size = 0x4, offset = 0x4, fixed_abs, tag = 'smem constant byte address 0x4 - core index']
  #allocation1 [shape = 'u32[144,128]{1,0:T(1,128)}', space=vmem, size = 0x12000, scoped, tag = 'internal scratch']
  #allocation2 [shape = 'f32[4,128]{1,0:T(4,128)}', space=vmem, size = 0x800, scoped, tag = 'scratch operand']
  #allocation3 [shape = 'f32[4,128]{1,0:T(4,128)}', space=vmem, size = 0x800, scoped, tag = 'scratch operand']
  #allocation4 [shape = 'f32[4,128]{1,0:T(4,128)}', space=vmem, size = 0x800, scoped, tag = 'scratch operand']
  #allocation5 [shape = 'f32[1,128]{1,0:T(1,128)}', space=vmem, size = 0x200, scoped, tag = 'scratch operand']
  %s0 = inlined_call_operand.hbm [shape: f32[2,4,4,128], index: 0, kind: input, shape index: {}]
  %s1 = inlined_call_operand.hbm [shape: s32[2,1,4,128], index: 1, kind: input, shape index: {}]
  %s2 = inlined_call_operand.vmem [shape: f32[2,1,4,3], index: 2, kind: output, shape index: {0}]
  %s3 = inlined_call_operand.vmem [shape: f32[2,1,1,1], index: 3, kind: output, shape index: {1}]
  %4 = xla_tuple %s2, %s3
  %s5 = sld [smem:[#allocation0]]
  $region65: #{tpu_custom_call.1} parent=0
    _
  %s7 = ssub.s32 1, %s5
  %s8 = scalar_select 0, %s7, %s5
  $region1: #{tpu_custom_call.1} parent=0
    #allocation6 [shape = 'u8[16384]{0}', space=vmem, size = 0x4000, scoped, tag = 'input window, operand 0']
    #allocation7 [shape = 's32[2]{0}', space=sflag, size = 0x8, scoped, tag = 'scoped memory for tpu_custom_call.1']
    #allocation8 [shape = 'u8[4096]{0}', space=vmem, size = 0x1000, scoped, tag = 'input window, operand 1']
    #allocation9 [shape = 's32[2]{0}', space=sflag, size = 0x8, scoped, tag = 'scoped memory for tpu_custom_call.1']
    %9 = vsyncpa [#allocation7], 0
    %s10 = scalar_lea.sflag [#allocation7], 1
    %11 = vsyncpa %s10, 0
    %12 = vsyncpa [#allocation9], 0
    %s13 = scalar_lea.sflag [#allocation9], 1
    %14 = vsyncpa %s13, 0
    loop: start=0, step=1, limit=4
    $region2: #{tpu_custom_call.1} parent=1 // loop_pre_header
      _
    $region3: #{tpu_custom_call.1} parent=1 // loop_header
      %s16 = sphi 0, %s20
      %p17 = scmp.ge.s32.totalorder %s16, 4
      %s23 = sphi 0, %s42
      %s24 = sphi 0, %s38
      %s25 = sphi 0, %s34
      %s26 = sphi 0, %s23
      %s27 = sphi 0, %s24
      %s28 = sphi 0, %s25
      %s29 = sphi 0, %s26
      %s30 = sphi 0, %s27
      %s31 = sphi 0, %s28
      %s49 = sphi 0, %s51
      %s52 = sphi 0, %s49
      %s53 = sphi 0, %s52
      %s69 = sphi 0, %s53
      %s79 = sphi 0, %s81
      %s82 = sphi 0, %s79
      %s83 = sphi 0, %s82
      %s99 = sphi 0, %s83
      %s107 = sphi 0, %s109
      %s110 = sphi 0, %s107
      %s111 = sphi 0, %s110
      %s127 = sphi 0, %s111
      %s135 = sphi 0, %s137
      %s138 = sphi 0, %s135
      %s139 = sphi 0, %s138
      %s155 = sphi 0, %s139
    $region4: #{tpu_custom_call.1} parent=1 // loop_header_branch
      %19 = sbr.rel (%p17) target = $region8
    $region5: #{tpu_custom_call.1} parent=1 // loop_body
      %s21 = ssub.s32 %s16, 1
      %s22 = ssub.s32 %s16, 2
      %s32 = sadd.s32 1, %s25
      %p33 = scmp.ge.s32.totalorder %s32, 1
      %s34 = scalar_select %p33, 0, %s32
      %s35 = sadd.s32 1, %s24
      %s36 = scalar_select %p33, %s35, %s24
      %p37 = scmp.ge.s32.totalorder %s36, 1
      %s38 = scalar_select %p37, 0, %s36
      %s39 = sadd.s32 1, %s23
      %s40 = scalar_select %p37, %s39, %s23
      %p41 = scmp.ge.s32.totalorder %s40, 2
      %s42 = scalar_select %p41, 0, %s40
      %s43 = sadd.s32 %s24, %s25
      %s44 = sadd.s32 %s38, %s34
      %s45 = ssub.s32 %s23, %s42
      %s46 = ssub.s32 %s43, %s44
      %s47 = sor.u32 %s45, %s46
      %p48 = scmp.eq.s32.totalorder %s47, 0
      %s50 = sadd.s32 %s49, 1
      %s51 = scalar_select %p48, %s49, %s50
      %p54 = pneg %p48
      %p55 = scmp.eq.s32.totalorder %s16, 1
      %p56 = por %p54, %p55
      %p57 = scmp.ne.s32.totalorder %s49, %s52
      %p58 = scmp.eq.s32.totalorder %s16, 0
      %p59 = por %p57, %p58
      %p60 = scmp.ne.s32.totalorder %s49, %s52
      %p61 = scmp.eq.s32.totalorder %s21, 1
      %p62 = por %p60, %p61
      %p63 = scmp.ne.s32.totalorder %s52, %s53
      %p64 = scmp.eq.s32.totalorder %s21, 0
      %p65 = por %p63, %p64
      %p66 = scmp.ne.s32.totalorder %s52, %s53
      %p67 = scmp.eq.s32.totalorder %s22, 1
      %p68 = por %p66, %p67
      %p70 = scmp.ne.s32.totalorder %s53, %s69
      %p71 = scmp.eq.s32.totalorder %s22, 0
      %p72 = por %p70, %p71
      %s73 = sadd.s32 %s24, %s25
      %s74 = sadd.s32 %s38, %s34
      %s75 = ssub.s32 %s23, %s42
      %s76 = ssub.s32 %s73, %s74
      %s77 = sor.u32 %s75, %s76
      %p78 = scmp.eq.s32.totalorder %s77, 0
      %s80 = sadd.s32 %s79, 1
      %s81 = scalar_select %p78, %s79, %s80
      %p84 = pneg %p78
      %p85 = scmp.eq.s32.totalorder %s16, 1
      %p86 = por %p84, %p85
      %p87 = scmp.ne.s32.totalorder %s79, %s82
      %p88 = scmp.eq.s32.totalorder %s16, 0
      %p89 = por %p87, %p88
      %p90 = scmp.ne.s32.totalorder %s79, %s82
      %p91 = scmp.eq.s32.totalorder %s21, 1
      %p92 = por %p90, %p91
      %p93 = scmp.ne.s32.totalorder %s82, %s83
      %p94 = scmp.eq.s32.totalorder %s21, 0
      %p95 = por %p93, %p94
      %p96 = scmp.ne.s32.totalorder %s82, %s83
      %p97 = scmp.eq.s32.totalorder %s22, 1
      %p98 = por %p96, %p97
      %p100 = scmp.ne.s32.totalorder %s83, %s99
      %p101 = scmp.eq.s32.totalorder %s22, 0
      %p102 = por %p100, %p101
      %s103 = ssub.s32 %s23, %s42
      %s104 = ssub.s32 %s24, %s38
      %s105 = sor.u32 %s103, %s104
      %p106 = scmp.eq.s32.totalorder %s105, 0
      %s108 = sadd.s32 %s107, 1
      %s109 = scalar_select %p106, %s107, %s108
      %p112 = pneg %p106
      %p113 = scmp.eq.s32.totalorder %s16, 1
      %p114 = por %p112, %p113
      %p115 = scmp.ne.s32.totalorder %s107, %s110
      %p116 = scmp.eq.s32.totalorder %s16, 0
      %p117 = por %p115, %p116
      %p118 = scmp.ne.s32.totalorder %s107, %s110
      %p119 = scmp.eq.s32.totalorder %s21, 1
      %p120 = por %p118, %p119
      %p121 = scmp.ne.s32.totalorder %s110, %s111
      %p122 = scmp.eq.s32.totalorder %s21, 0
      %p123 = por %p121, %p122
      %p124 = scmp.ne.s32.totalorder %s110, %s111
      %p125 = scmp.eq.s32.totalorder %s22, 1
      %p126 = por %p124, %p125
      %p128 = scmp.ne.s32.totalorder %s111, %s127
      %p129 = scmp.eq.s32.totalorder %s22, 0
      %p130 = por %p128, %p129
      %s131 = ssub.s32 %s23, %s42
      %s132 = ssub.s32 %s24, %s38
      %s133 = sor.u32 %s131, %s132
      %p134 = scmp.eq.s32.totalorder %s133, 0
      %s136 = sadd.s32 %s135, 1
      %s137 = scalar_select %p134, %s135, %s136
      %p140 = pneg %p134
      %p141 = scmp.eq.s32.totalorder %s16, 1
      %p142 = por %p140, %p141
      %p143 = scmp.ne.s32.totalorder %s135, %s138
      %p144 = scmp.eq.s32.totalorder %s16, 0
      %p145 = por %p143, %p144
      %p146 = scmp.ne.s32.totalorder %s135, %s138
      %p147 = scmp.eq.s32.totalorder %s21, 1
      %p148 = por %p146, %p147
      %p149 = scmp.ne.s32.totalorder %s138, %s139
      %p150 = scmp.eq.s32.totalorder %s21, 0
      %p151 = por %p149, %p150
      %p152 = scmp.ne.s32.totalorder %s138, %s139
      %p153 = scmp.eq.s32.totalorder %s22, 1
      %p154 = por %p152, %p153
      %p156 = scmp.ne.s32.totalorder %s139, %s155
      %p157 = scmp.eq.s32.totalorder %s22, 0
      %p158 = por %p156, %p157
      %p159 = scmp.le.s32.totalorder 1, %s16
      %p160 = scmp.lt.s32.totalorder %s16, 3
      %p161 = pnand %p159, %p160
      %p162 = pneg %p161
      // Predicated region
      $region9: #{tpu_custom_call.1} parent=5 // pred_check
        _
      $region10: #{tpu_custom_call.1} parent=5 // pred_check_branch
        %164 = sbr.rel (%p161) target = $region12
      $region11: #{tpu_custom_call.1} parent=5 // pred_region
        %s165 = ssub.s32 %s16, 1
      $region12: #{tpu_custom_call.1} parent=5 // pred_fallthru
        _
      %p166 = scmp.lt.s32.totalorder %s16, 2
      // Predicated region
      $region13: #{tpu_custom_call.1} parent=5 // pred_check
        %p167 = pneg %p166
      $region14: #{tpu_custom_call.1} parent=5 // pred_check_branch
        %169 = sbr.rel (%p167) target = $region16
      $region15: #{tpu_custom_call.1} parent=5 // pred_region
        // Predicated region
        $region17: #{tpu_custom_call.1} parent=15 // pred_check
          %p170 = pneg %p59
        $region18: #{tpu_custom_call.1} parent=15 // pred_check_branch
          %172 = sbr.rel (%p170) target = $region20
        $region19: #{tpu_custom_call.1} parent=15 // pred_region
          %s173 = sand.u32 %s49, 1
          %s174 = scalar_lea.sflag [#allocation7], %s173
          %s175 = sand.u32 %s49, 1
          %s176 = smul.addr %s175, 16
          %s177 = scalar_lea.vmem [#allocation6], %s176
          %s178 = sadd.s32 %s24, %s25
          %s180 = ssub.s32 256, 256
          %181 = vsyncadd %s174, %s180
          %s182 = smul.addr %s23, 4
          %s183 = sadd.s32 %s178, %s182
          %s184 = smul.addr %s183, 64
          %s185 = scalar_lea.hbm %s0, %s184
          %s186 = sshll.u32 %s177, 4
          %s187 = int_to_ptr.vmem [resolvable:$true] %s186
          %192 = dma.hbm_to_vmem [thread:$0]  %s185, 256, %s187, %s174, 64, 64, 4
        $region20: #{tpu_custom_call.1} parent=15 // pred_fallthru
          _
        // Predicated region
        $region21: #{tpu_custom_call.1} parent=15 // pred_check
          %p193 = pneg %p89
        $region22: #{tpu_custom_call.1} parent=15 // pred_check_branch
          %195 = sbr.rel (%p193) target = $region24
        $region23: #{tpu_custom_call.1} parent=15 // pred_region
          %s196 = sand.u32 %s79, 1
          %s197 = scalar_lea.sflag [#allocation9], %s196
          %s198 = sand.u32 %s79, 1
          %s199 = smul.addr %s198, 4
          %s200 = scalar_lea.vmem [#allocation8], %s199
          %s201 = sadd.s32 %s24, %s25
          %s203 = ssub.s32 64, 64
          %204 = vsyncadd %s197, %s203
          %s205 = sadd.s32 %s201, %s23
          %s206 = smul.addr %s205, 64
          %s207 = scalar_lea.hbm %s1, %s206
          %s209 = sshll.u32 %s200, 4
          %s210 = int_to_ptr.vmem [resolvable:$true] %s209
          %212 = dma.hbm_to_vmem [thread:$0]  %s207, 64, %s210, %s197
        $region24: #{tpu_custom_call.1} parent=15 // pred_fallthru
          _
      $region16: #{tpu_custom_call.1} parent=5 // pred_fallthru
        _
      %p213 = scmp.le.s32.totalorder 1, %s16
      %p214 = scmp.lt.s32.totalorder %s16, 3
      %p215 = pnand %p213, %p214
      %p216 = pneg %p215
      // Predicated region
      $region25: #{tpu_custom_call.1} parent=5 // pred_check
        _
      $region26: #{tpu_custom_call.1} parent=5 // pred_check_branch
        %218 = sbr.rel (%p215) target = $region28
      $region27: #{tpu_custom_call.1} parent=5 // pred_region
        %s219 = ssub.s32 %s16, 1
        %s220 = sand.u32 %s52, 1
        %s221 = scalar_lea.sflag [#allocation7], %s220
        %s222 = sand.u32 %s52, 1
        %s223 = smul.addr %s222, 16
        %s224 = scalar_lea.vmem [#allocation6], %s223
        // Predicated region
        $region29: #{tpu_custom_call.1} parent=27 // pred_check
          %p225 = pneg %p65
        $region30: #{tpu_custom_call.1} parent=27 // pred_check_branch
          %227 = sbr.rel (%p225) target = $region32
        $region31: #{tpu_custom_call.1} parent=27 // pred_region
          %228 = dma.done %s221, 256
        $region32: #{tpu_custom_call.1} parent=27 // pred_fallthru
          _
        %s229 = sand.u32 %s82, 1
        %s230 = scalar_lea.sflag [#allocation9], %s229
        %s231 = sand.u32 %s82, 1
        %s232 = smul.addr %s231, 4
        %s233 = scalar_lea.vmem [#allocation8], %s232
        // Predicated region
        $region33: #{tpu_custom_call.1} parent=27 // pred_check
          %p234 = pneg %p95
        $region34: #{tpu_custom_call.1} parent=27 // pred_check_branch
          %236 = sbr.rel (%p234) target = $region36
        $region35: #{tpu_custom_call.1} parent=27 // pred_region
          %237 = dma.done %s230, 64
        $region36: #{tpu_custom_call.1} parent=27 // pred_fallthru
          _
        %s238 = sand.u32 %s52, 1
        %s239 = scalar_lea.sflag [#allocation7], %s238
        %s240 = sand.u32 %s52, 1
        %s241 = smul.addr %s240, 16
        %s242 = scalar_lea.vmem [#allocation6], %s241
        %p243 = pneg %p65
        %p244 = pneg %p62
        %s245 = sand.u32 %s82, 1
        %s246 = scalar_lea.sflag [#allocation9], %s245
        %s247 = sand.u32 %s82, 1
        %s248 = smul.addr %s247, 4
        %s249 = scalar_lea.vmem [#allocation8], %s248
        %p250 = pneg %p95
        %p251 = pneg %p92
        %p252 = pneg %p123
        %p253 = pneg %p120
        %p254 = scmp.lt.s32.totalorder %s26, 1
        %s255 = scalar_select %p254, %s26, 1
        %p256 = scmp.lt.s32.totalorder %s27, 0
        %s257 = scalar_select %p256, %s27, 0
        %s258 = sadd.s32 %s257, %s255
        %s259 = smul.addr %s258, 4
        %s260 = scalar_lea.vmem %s2, %s259
        %p261 = pneg %p151
        %p262 = pneg %p148
        %p263 = scmp.lt.s32.totalorder %s26, 1
        %s264 = scalar_select %p263, %s26, 1
        %p265 = scmp.lt.s32.totalorder %s27, 0
        %s266 = scalar_select %p265, %s27, 0
        %s267 = sadd.s32 %s266, %s264
        %s268 = scalar_lea.vmem %s3, %s267
        %s269 = sadd.s32 %s27, %s28
        %s270 = sadd.s32 %s27, %s28
        %p271 = scmp.lt.s32.totalorder %s26, 1
        %s272 = scalar_select %p271, %s26, 1
        %p273 = scmp.lt.s32.totalorder %s27, 0
        %s274 = scalar_select %p273, %s27, 0
        %s275 = sadd.s32 %s274, %s272
        %s276 = smul.addr %s275, 4
        %s277 = scalar_lea.vmem %s2, %s276
        %p278 = scmp.lt.s32.totalorder %s26, 1
        %s279 = scalar_select %p278, %s26, 1
        %p280 = scmp.lt.s32.totalorder %s27, 0
        %s281 = scalar_select %p280, %s27, 0
        %s282 = sadd.s32 %s281, %s279
        %s283 = scalar_lea.vmem %s3, %s282
        %p284 = scmp.eq.s32.totalorder %s28, 0
        // Predicated region
        $region37: #{tpu_custom_call.1} parent=27 // pred_check
          %p285 = pneg %p284
        $region38: #{tpu_custom_call.1} parent=27 // pred_check_branch
          %287 = sbr.rel (%p285) target = $region40
        $region39: #{tpu_custom_call.1} parent=27 // pred_region
          %288 = vst [vmem:[#allocation2] sm:$0xf] 0.0
          %289 = vst [vmem:[#allocation3] sm:$0xf] 0.0
          %290 = vst [vmem:[#allocation4] sm:$0xf] 0.0
          %291 = vst [vmem:[#allocation5] sm:$0x1] 0.0
        $region40: #{tpu_custom_call.1} parent=27 // pred_fallthru
          _
        %v292 = vld [vmem:[%s224] sm:$0xf]
        %v293 = vld [vmem:[%s224 + $0x4] sm:$0xf]
        %v294 = vld [vmem:[%s224 + $0x8] sm:$0xf]
        %v295 = vld [vmem:[%s224 + $0xc] sm:$0xf]
        %v296 = vld [vmem:[%s233] sm:$0xf]
        %vm297 = vcmask 1043456
        %v298 = vsel %vm297, %v292, -inf
        %v299 = vsel %vm297, %v293, -inf
        %v300 = vsel %vm297, %v294, -inf
        %v301 = vsel %vm297, %v295, -inf
        %v302 = vmax.f32 %v298, %v299
        %v303 = vmax.f32 %v300, %v301
        %v304 = vmax.f32 %v302, %v303
        %v305 = vsub.f32 %v292, %v304
        %v306 = vsub.f32 %v293, %v304
        %v307 = vsub.f32 %v294, %v304
        %v308 = vsub.f32 %v295, %v304
        %v309 = vmul.f32 %v305, 1.442695
        %v310 = vpow.pop %v309
        %v311 = vmul.f32 %v306, 1.442695
        %v312 = vpow.pop %v311
        %v313 = vmul.f32 %v307, 1.442695
        %v314 = vpow.pop %v313
        %v315 = vmul.f32 %v308, 1.442695
        %v316 = vpow.pop %v315
        %v317 = vsel %vm297, %v310, 0.0
        %v318 = vsel %vm297, %v312, 0.0
        %v319 = vadd.f32 %v317, %v318
        %v320 = vsel %vm297, %v314, 0.0
        %v321 = vadd.f32 %v319, %v320
        %v322 = vsel %vm297, %v316, 0.0
        %v323 = vadd.f32 %v321, %v322
        %v324 = vrcp.pop %v323
        %v325 = vmul.f32 %v310, %v324
        %v326 = vmul.f32 %v312, %v324
        %v327 = vmul.f32 %v314, %v324
        %v328 = vmul.f32 %v316, %v324
        %vm329 = vcmp.eq.s32.totalorder %v296, 0
        %vm330 = vcmp.eq.s32.totalorder %v296, 1
        %vm331 = vcmp.eq.s32.totalorder %v296, 2
        %vm332 = vcmp.eq.s32.totalorder %v296, 3
        %v333 = vsel %vm329, 1, 0
        %v334 = vsel %vm330, 1, 0
        %v335 = vsel %vm331, 1, 0
        %v336 = vsel %vm332, 1, 0
        %v337 = vcvt.s32.f32 %v333
        %v338 = vcvt.s32.f32 %v334
        %v339 = vcvt.s32.f32 %v335
        %v340 = vcvt.s32.f32 %v336
        %v341 = vmul.f32 %v325, %v337
        %v342 = vmul.f32 %v326, %v338
        %v343 = vmul.f32 %v327, %v339
        %v344 = vmul.f32 %v328, %v340
        %v345 = vsel %vm297, %v341, 0.0
        %v346 = vsel %vm297, %v342, 0.0
        %v347 = vadd.f32 %v345, %v346
        %v348 = vsel %vm297, %v343, 0.0
        %v349 = vadd.f32 %v347, %v348
        %v350 = vsel %vm297, %v344, 0.0
        %v351 = vadd.f32 %v349, %v350
        %v352 = vsub.f32 1.0, %v351
        %v353 = vmax.f32 %v352, 0.0
        %v354 = vmax.f32 %v351, 1e-30
        %v355 = vlog2.pop %v354
        %v356 = vmul.f32 %v355, 0.6931472
        %v357 = vsub.f32 0.0, %v356
        %v358 = vmul.f32 %v353, %v353
        %v359 = vmul.f32 %v358, %v357
        %v360 = vld [vmem:[#allocation2] sm:$0xf]
        %v361 = vrot.slane %v345, 4
        %v362 = vadd.f32 %v345, %v361
        %v363 = vrot.slane %v362, 2
        %v364 = vadd.f32 %v362, %v363
        %v365 = vrot.slane %v364, 1
        %v366 = vadd.f32 %v364, %v365
        %v367 = vrot.slane %v346, 4
        %v368 = vadd.f32 %v346, %v367
        %v369 = vrot.slane %v368, 2
        %v370 = vadd.f32 %v368, %v369
        %v371 = vrot.slane %v370, 1
        %v372 = vadd.f32 %v370, %v371
        %v373 = vrot.slane %v348, 4
        %v374 = vadd.f32 %v348, %v373
        %v375 = vrot.slane %v374, 2
        %v376 = vadd.f32 %v374, %v375
        %v377 = vrot.slane %v376, 1
        %v378 = vadd.f32 %v376, %v377
        %v379 = vrot.slane %v350, 4
        %v380 = vadd.f32 %v350, %v379
        %v381 = vrot.slane %v380, 2
        %v382 = vadd.f32 %v380, %v381
        %v383 = vrot.slane %v382, 1
        %v384 = vadd.f32 %v382, %v383
        %vm389 = vcmask 1041409
        %v390 = vsel %vm389, %v372, %v366
        %vm391 = vcmask 1042434
        %v392 = vsel %vm391, %v378, %v390
        %vm393 = vcmask 1043459
        %v394 = vsel %vm393, %v384, %v392
        %v396 = vadd.f32 %v360, %v394
        %397 = vst [vmem:[#allocation2] sm:$0xf] %v396
        %v398 = vld [vmem:[#allocation4] sm:$0xf]
        %v399 = vsel %vm297, %v337, 0.0
        %v400 = vrot.slane %v399, 4
        %v401 = vadd.f32 %v399, %v400
        %v402 = vrot.slane %v401, 2
        %v403 = vadd.f32 %v401, %v402
        %v404 = vrot.slane %v403, 1
        %v405 = vadd.f32 %v403, %v404
        %v406 = vsel %vm297, %v338, 0.0
        %v407 = vrot.slane %v406, 4
        %v408 = vadd.f32 %v406, %v407
        %v409 = vrot.slane %v408, 2
        %v410 = vadd.f32 %v408, %v409
        %v411 = vrot.slane %v410, 1
        %v412 = vadd.f32 %v410, %v411
        %v413 = vsel %vm297, %v339, 0.0
        %v414 = vrot.slane %v413, 4
        %v415 = vadd.f32 %v413, %v414
        %v416 = vrot.slane %v415, 2
        %v417 = vadd.f32 %v415, %v416
        %v418 = vrot.slane %v417, 1
        %v419 = vadd.f32 %v417, %v418
        %v420 = vsel %vm297, %v340, 0.0
        %v421 = vrot.slane %v420, 4
        %v422 = vadd.f32 %v420, %v421
        %v423 = vrot.slane %v422, 2
        %v424 = vadd.f32 %v422, %v423
        %v425 = vrot.slane %v424, 1
        %v426 = vadd.f32 %v424, %v425
        %v431 = vsel %vm389, %v412, %v405
        %v432 = vsel %vm391, %v419, %v431
        %v433 = vsel %vm393, %v426, %v432
        %v435 = vadd.f32 %v398, %v433
        %436 = vst [vmem:[#allocation4] sm:$0xf] %v435
        %v437 = vld [vmem:[#allocation3] sm:$0xf]
        %v438 = vsel %vm297, %v325, 0.0
        %v439 = vrot.slane %v438, 4
        %v440 = vadd.f32 %v438, %v439
        %v441 = vrot.slane %v440, 2
        %v442 = vadd.f32 %v440, %v441
        %v443 = vrot.slane %v442, 1
        %v444 = vadd.f32 %v442, %v443
        %v445 = vsel %vm297, %v326, 0.0
        %v446 = vrot.slane %v445, 4
        %v447 = vadd.f32 %v445, %v446
        %v448 = vrot.slane %v447, 2
        %v449 = vadd.f32 %v447, %v448
        %v450 = vrot.slane %v449, 1
        %v451 = vadd.f32 %v449, %v450
        %v452 = vsel %vm297, %v327, 0.0
        %v453 = vrot.slane %v452, 4
        %v454 = vadd.f32 %v452, %v453
        %v455 = vrot.slane %v454, 2
        %v456 = vadd.f32 %v454, %v455
        %v457 = vrot.slane %v456, 1
        %v458 = vadd.f32 %v456, %v457
        %v459 = vsel %vm297, %v328, 0.0
        %v460 = vrot.slane %v459, 4
        %v461 = vadd.f32 %v459, %v460
        %v462 = vrot.slane %v461, 2
        %v463 = vadd.f32 %v461, %v462
        %v464 = vrot.slane %v463, 1
        %v465 = vadd.f32 %v463, %v464
        %v470 = vsel %vm389, %v451, %v444
        %v471 = vsel %vm391, %v458, %v470
        %v472 = vsel %vm393, %v465, %v471
        %v474 = vadd.f32 %v437, %v472
        %475 = vst [vmem:[#allocation3] sm:$0xf] %v474
        %v476 = vld [vmem:[#allocation5] sm:$0x1]
        %v477 = vsel %vm297, %v359, 0.0
        %v478 = vrot.slane %v477, 4
        %v479 = vadd.f32 %v477, %v478
        %v480 = vrot.slane %v479, 2
        %v481 = vadd.f32 %v479, %v480
        %v482 = vrot.slane %v481, 1
        %v483 = vadd.f32 %v481, %v482
        %v484 = vadd.f32 %v476, %v483
        %485 = vst [vmem:[#allocation5] sm:$0x1] %v484
        // Predicated region
        $region41: #{tpu_custom_call.1} parent=27 // pred_check
          %p486 = pneg %p284
        $region42: #{tpu_custom_call.1} parent=27 // pred_check_branch
          %488 = sbr.rel (%p486) target = $region44
        $region43: #{tpu_custom_call.1} parent=27 // pred_region
          %v489 = vld [vmem:[#allocation2] sm:$0xf]
          %v490 = vsel %vm297, %v489, 0.0
          %491 = vadd.xlane.f32.xlu0 %v490
          %v492 = vpop.xlane.xlu0 %491
          %v493 = vld [vmem:[#allocation3] sm:$0xf]
          %v494 = vsel %vm297, %v493, 0.0
          %495 = vadd.xlane.f32.xlu0 %v494
          %v496 = vpop.xlane.xlu0 %495
          %v497 = vld [vmem:[#allocation4] sm:$0xf]
          %v498 = vsel %vm297, %v497, 0.0
          %499 = vadd.xlane.f32.xlu0 %v498
          %v500 = vpop.xlane.xlu0 %499
          %v501 = vlaneseq
          %v502 = vand.u32 %v501, 127
          %vm503 = vcmp.eq.s32.totalorder %v502, 0
          %vm504 = vcmp.eq.s32.totalorder %v502, 1
          %v505 = vsel %vm504, %v496, %v500
          %v506 = vsel %vm503, %v492, %v505
          %vm507 = vcmask 19456
          %508 = vst.msk [vmem:[%s277] sm:$0xf] %vm507, %v506
          %v509 = vld [vmem:[#allocation5] sm:$0x1]
          %vm510 = vcmask 1040384
          %v511 = vsel %vm510, %v509, 0.0
          %512 = vadd.xlane.f32.xlu0 %v511
          %v513 = vpop.xlane.xlu0 %512
          %vm514 = vcmask 0
          %515 = vst.msk [vmem:[%s283] sm:$0x1] %vm514, %v513
        $region44: #{tpu_custom_call.1} parent=27 // pred_fallthru
          _
        %p516 = scmp.lt.s32.totalorder %s26, 1
        %s517 = scalar_select %p516, %s26, 1
        %p518 = scmp.lt.s32.totalorder %s27, 0
        %s519 = scalar_select %p518, %s27, 0
        %s520 = sadd.s32 %s519, %s517
        %s521 = smul.addr %s520, 4
        %s522 = scalar_lea.vmem %s2, %s521
        %p523 = scmp.lt.s32.totalorder %s26, 1
        %s524 = scalar_select %p523, %s26, 1
        %p525 = scmp.lt.s32.totalorder %s27, 0
        %s526 = scalar_select %p525, %s27, 0
        %s527 = sadd.s32 %s526, %s524
        %s528 = scalar_lea.vmem %s3, %s527
        // Predicated region
        $region45: #{tpu_custom_call.1} parent=27 // pred_check
          %p529 = pneg %p120
        $region46: #{tpu_custom_call.1} parent=27 // pred_check_branch
          %531 = sbr.rel (%p529) target = $region48
        $region47: #{tpu_custom_call.1} parent=27 // pred_region
          _
        $region48: #{tpu_custom_call.1} parent=27 // pred_fallthru
          _
        // Predicated region
        $region49: #{tpu_custom_call.1} parent=27 // pred_check
          %p532 = pneg %p148
        $region50: #{tpu_custom_call.1} parent=27 // pred_check_branch
          %534 = sbr.rel (%p532) target = $region52
        $region51: #{tpu_custom_call.1} parent=27 // pred_region
          _
        $region52: #{tpu_custom_call.1} parent=27 // pred_fallthru
          _
      $region28: #{tpu_custom_call.1} parent=5 // pred_fallthru
        _
      %p535 = scmp.le.s32.totalorder 2, %s16
      // Predicated region
      $region53: #{tpu_custom_call.1} parent=5 // pred_check
        %p536 = pneg %p535
      $region54: #{tpu_custom_call.1} parent=5 // pred_check_branch
        %538 = sbr.rel (%p536) target = $region56
      $region55: #{tpu_custom_call.1} parent=5 // pred_region
        %s539 = ssub.s32 %s16, 2
        // Predicated region
        $region57: #{tpu_custom_call.1} parent=55 // pred_check
          %p540 = pneg %p126
        $region58: #{tpu_custom_call.1} parent=55 // pred_check_branch
          %542 = sbr.rel (%p540) target = $region60
        $region59: #{tpu_custom_call.1} parent=55 // pred_region
          %p543 = scmp.lt.s32.totalorder %s29, 1
          %s544 = scalar_select %p543, %s29, 1
          %p545 = scmp.lt.s32.totalorder %s30, 0
          %s546 = scalar_select %p545, %s30, 0
          %s547 = sadd.s32 %s546, %s544
          %s548 = smul.addr %s547, 4
          %s549 = scalar_lea.vmem %s2, %s548
        $region60: #{tpu_custom_call.1} parent=55 // pred_fallthru
          _
        // Predicated region
        $region61: #{tpu_custom_call.1} parent=55 // pred_check
          %p550 = pneg %p154
        $region62: #{tpu_custom_call.1} parent=55 // pred_check_branch
          %552 = sbr.rel (%p550) target = $region64
        $region63: #{tpu_custom_call.1} parent=55 // pred_region
          %p553 = scmp.lt.s32.totalorder %s29, 1
          %s554 = scalar_select %p553, %s29, 1
          %p555 = scmp.lt.s32.totalorder %s30, 0
          %s556 = scalar_select %p555, %s30, 0
          %s557 = sadd.s32 %s556, %s554
          %s558 = scalar_lea.vmem %s3, %s557
        $region64: #{tpu_custom_call.1} parent=55 // pred_fallthru
          _
      $region56: #{tpu_custom_call.1} parent=5 // pred_fallthru
        _
    $region6: #{tpu_custom_call.1} parent=1 // loop_footer
      %s20 = sadd.s32 1, %s16
    $region7: #{tpu_custom_call.1} parent=1 // loop_footer_branch
      %15 = sbr.rel target = $region3
    $region8: #{tpu_custom_call.1} parent=1 // loop_exit
      _
    %559 = vsyncpa [#allocation7], 1
    %s560 = scalar_lea.sflag [#allocation7], 1
    %561 = vsyncpa %s560, 1
    %562 = vsyncpa [#allocation9], 1
    %s563 = scalar_lea.sflag [#allocation9], 1
    %564 = vsyncpa %s563, 1

</llo_original>
